<compile_context>
chip_gen: v7x
topology: tpu7x:2x2x1
jax: 0.10.0
libtpu: 0.0.40
codegen_flags: <defaults>
</compile_context>

<pallas_src>
import jax
import jax.numpy as jnp
from jax.experimental import pallas as pl
from jax.experimental.pallas import tpu as pltpu


# ----------------------------------------------------------------------------
# Kernel: one (tm, K) x (K, N) matmul tile + bias add.  Same body for the
# grid-free and the M-tiled paths, and for both layouts (N=32 or N=K=128).
# ----------------------------------------------------------------------------
def _linear_kernel(x_ref, w_ref, b_ref, o_ref):
    acc = jnp.dot(x_ref[...], w_ref[...], preferred_element_type=jnp.float32)
    o_ref[...] = (acc + b_ref[...]).astype(o_ref.dtype)


def _cost(M, K, N):
    # Real (unpadded) kernel shapes — advisory hint for XLA's scheduler.
    return pl.CostEstimate(
        flops=2 * M * K * N,
        transcendentals=0,
        bytes_accessed=4 * (M * K + K * N + N + M * N),
    )


# ----------------------------------------------------------------------------
# Grid-free path: single block, everything VMEM-resident for the call.
# Used when M is small enough that fixed launch cost dominates.
# ----------------------------------------------------------------------------
def _linear_small(x_2d, w_kn, b_1n):
    M, K = x_2d.shape
    N = w_kn.shape[1]
    return pl.pallas_call(
        _linear_kernel,
        out_shape=jax.ShapeDtypeStruct((M, N), x_2d.dtype),
        in_specs=[
            pl.BlockSpec(memory_space=pltpu.MemorySpace.VMEM),
            pl.BlockSpec(memory_space=pltpu.MemorySpace.VMEM),
            pl.BlockSpec(memory_space=pltpu.MemorySpace.VMEM),
        ],
        out_specs=pl.BlockSpec(memory_space=pltpu.MemorySpace.VMEM),
        cost_estimate=_cost(M, K, N),
    )(x_2d, w_kn, b_1n)


# ----------------------------------------------------------------------------
# M-tiled path: pipelined x/out tiles (cdiv grid, partial last block OK),
# W/b VMEM-resident via constant index_map, "parallel" so v7x megacore
# shards the tiles across its two TensorCores.
# ----------------------------------------------------------------------------
def _linear_tiled(x_2d, w_kn, b_1n, tm):
    M, K = x_2d.shape
    N = w_kn.shape[1]
    grid = (pl.cdiv(M, tm),)
    return pl.pallas_call(
        _linear_kernel,
        out_shape=jax.ShapeDtypeStruct((M, N), x_2d.dtype),
        grid_spec=pltpu.PrefetchScalarGridSpec(
            num_scalar_prefetch=0,
            grid=grid,
            in_specs=[
                pl.BlockSpec((tm, K), lambda i: (i, 0)),
                pl.BlockSpec((K, N), lambda i: (0, 0)),   # W stays VMEM-resident
                pl.BlockSpec((1, N), lambda i: (0, 0)),   # b stays VMEM-resident
            ],
            out_specs=pl.BlockSpec((tm, N), lambda i: (i, 0)),
        ),
        compiler_params=pltpu.CompilerParams(
            dimension_semantics=("parallel",),
        ),
        cost_estimate=_cost(M, K, N),
    )(x_2d, w_kn, b_1n)


_SMALL_M_ROWS = 1024   # <= this many kernel rows: grid-free single-block call
_TM_PREF = 2048        # preferred M tile (f32 x/out double-buffered ~4 MiB)
_TM_MIN = 256


def _choose_tm(m_rows):
    # Prefer a big tile (amortize ~0.35 us per-step pipeline overhead), but
    # keep the grid >= 4 tiles so both v7x TensorCores get work.
    tm = _TM_PREF
    while tm > _TM_MIN and pl.cdiv(m_rows, tm) < 4:
        tm //= 2
    return tm


def pallas_linear(x_2d, w_kn, b_1n):
    """y = x_2d @ w_kn + b_1n (already in the layout the kernel expects)."""
    M = x_2d.shape[0]
    if M <= _SMALL_M_ROWS:
        return _linear_small(x_2d, w_kn, b_1n)
    return _linear_tiled(x_2d, w_kn, b_1n, _choose_tm(M))


def _block_diag(w, copies):
    """Block-diagonal stack of `copies` copies of w (built once at init)."""
    K, N = w.shape
    out = jnp.zeros((copies * K, copies * N), dtype=w.dtype)
    for c in range(copies):
        out = out.at[c * K:(c + 1) * K, c * N:(c + 1) * N].set(w)
    return out


class WrapperPallas:
    """JAX/Pallas equivalent of the PyTorch `Wrapper` around nn.Linear."""

    _PACK = 4  # 4 x 32 = 128 lanes: full vreg lane occupancy for x and y

    def __init__(self, weight_nk, bias_n):
        # PyTorch Linear: W is (out, in), b is (out,).
        w = jnp.asarray(weight_nk)
        b = jnp.asarray(bias_n)
        self.n_in = w.shape[1]
        self.n_out = w.shape[0]
        # Fallback layout (M % 4 != 0): plain W^T (K, N) and (1, N) bias.
        self.w_kn = w.T
        self.b_1n = b[None, :]
        # Block-diagonal layout: (4K, 4N) weight, (1, 4N) bias.  Zero padded
        # bytes in HBM, lane-dense loads/stores, native 128x128 MXU tile.
        self.w_bd = _block_diag(self.w_kn, self._PACK)
        self.b_bd = jnp.tile(self.b_1n, (1, self._PACK))

    def _module(self, x):
        # nn.Linear acts on the last dim; flatten leading dims (glue).
        lead = x.shape[:-1]
        K = x.shape[-1]
        x_2d = x.reshape(-1, K)
        M = x_2d.shape[0]
        if M >= self._PACK and M % self._PACK == 0:
            # Block-diagonal repack: (M, 32) -> (M/4, 128), free row-major
            # reshape; result (M/4, 128) -> (M, 32) likewise.
            x_bd = x_2d.reshape(M // self._PACK, self._PACK * K)
            y_bd = pallas_linear(x_bd, self.w_bd, self.b_bd)
            y_2d = y_bd.reshape(M, self.n_out)
        else:
            y_2d = pallas_linear(x_2d, self.w_kn, self.b_1n)
        return y_2d.reshape(*lead, self.n_out)

    def forward(self, inputs):
        # Exactly mirrors: return [self.module(input[0]), *input[1:]]
        return [self._module(inputs[0]), *inputs[1:]]


if __name__ == "__main__":
    key = jax.random.PRNGKey(0)
    k_x, k_w, k_b, k_p1, k_p2, k_odd, k_big = jax.random.split(key, 7)

    batch, seq, hidden = 2, 8, 32

    # Deterministic parameters (PyTorch Linear shapes: W (out, in), b (out,)).
    weight = jax.random.normal(k_w, (hidden, hidden), dtype=jnp.float32) * 0.02
    bias = jax.random.normal(k_b, (hidden,), dtype=jnp.float32) * 0.01

    # input is a list: element 0 goes through the module, rest pass through.
    x0 = jax.random.normal(k_x, (batch, seq, hidden), dtype=jnp.float32)
    extra1 = jax.random.normal(k_p1, (batch, seq), dtype=jnp.float32)
    extra2 = jax.random.normal(k_p2, (4,), dtype=jnp.float32)
    inputs = [x0, extra1, extra2]

    wrapper = WrapperPallas(weight, bias)

    def ref_linear(x):
        return (x.reshape(-1, hidden) @ weight.T + bias).reshape(*x.shape[:-1], hidden)

    # --- small-M, block-diagonal grid-free path (M=16 rows -> (4,128) tile) ---
    out = wrapper.forward(inputs)
    out = [jax.block_until_ready(o) for o in out]
    assert out[0].shape == (batch, seq, hidden)
    assert jnp.allclose(out[0], ref_linear(x0), atol=2e-5, rtol=2e-5)
    assert out[1] is extra1 and out[2] is extra2

    # --- small-M fallback path (M=5 rows, not a multiple of 4) ---
    x_odd = jax.random.normal(k_odd, (5, hidden), dtype=jnp.float32)
    out_odd = wrapper.forward([x_odd])
    out_odd = [jax.block_until_ready(o) for o in out_odd]
    assert out_odd[0].shape == (5, hidden)
    assert jnp.allclose(out_odd[0], ref_linear(x_odd), atol=2e-5, rtol=2e-5)

    # --- large-M tiled path (9000 rows -> 2250 block-diag rows, cdiv grid
    #     with a partial last block, "parallel" megacore sharding) ---
    x_big = jax.random.normal(k_big, (9000, hidden), dtype=jnp.float32)
    out_big = wrapper.forward([x_big])
    out_big = [jax.block_until_ready(o) for o in out_big]
    assert out_big[0].shape == (9000, hidden)
    assert jnp.allclose(out_big[0], ref_linear(x_big), atol=2e-5, rtol=2e-5)

    print("KERNEL_OK")
</pallas_src>

<mosaic_0001>
module attributes {stable_mosaic.version = 11 : i64} {
  func.func @_linear_kernel(%arg0: memref<4x128xf32, #tpu.memory_space<vmem>>, %arg1: memref<128x128xf32, #tpu.memory_space<vmem>>, %arg2: memref<1x128xf32, #tpu.memory_space<vmem>>, %arg3: memref<4x128xf32, #tpu.memory_space<vmem>>) attributes {dimension_semantics = [], scalar_prefetch = 0 : i64, scratch_operands = 0 : i64, tpu.core_type = #tpu.core_type<tc>} {
    %c0 = arith.constant 0 : index
    %c0_0 = arith.constant 0 : index
    %0 = vector.load %arg0[%c0, %c0_0] : memref<4x128xf32, #tpu.memory_space<vmem>>, vector<4x128xf32>
    %c0_1 = arith.constant 0 : index
    %c0_2 = arith.constant 0 : index
    %1 = vector.load %arg1[%c0_1, %c0_2] : memref<128x128xf32, #tpu.memory_space<vmem>>, vector<128x128xf32>
    %cst = arith.constant dense<0.000000e+00> : vector<4x128xf32>
    %2 = tpu.matmul %0, %1, %cst {dimension_numbers = #tpu.dot_dimension_numbers<[1], [0], [0], [1], [0, 0, 1, 1], [], []>} : vector<4x128xf32>, vector<128x128xf32>, vector<4x128xf32> -> vector<4x128xf32>
    %c0_3 = arith.constant 0 : index
    %c0_4 = arith.constant 0 : index
    %3 = vector.load %arg2[%c0_3, %c0_4] : memref<1x128xf32, #tpu.memory_space<vmem>>, vector<1x128xf32>
    %4 = vector.broadcast %3 : vector<1x128xf32> to vector<4x128xf32>
    %5 = arith.addf %2, %4 : vector<4x128xf32>
    %c0_5 = arith.constant 0 : index
    %c0_6 = arith.constant 0 : index
    %6 = vector.load %arg3[%c0_5, %c0_6] : memref<4x128xf32, #tpu.memory_space<vmem>>, vector<4x128xf32>
    tpu.vector_store %arg3[%c0_5, %c0_6], %5 {strides = array<i32>} : memref<4x128xf32, #tpu.memory_space<vmem>>, vector<4x128xf32>,
    return
  }
}

</mosaic_0001>

<llo_original>
// kernel: tpu_custom_call.1
$region0: #{tpu_custom_call.1}
  #allocation0 [shape = 'u32[]', space=smem, size = 0x4, offset = 0x4, fixed_abs, tag = 'smem constant byte address 0x4 - core index']
  #allocation1 [shape = 'u32[144,128]{1,0:T(1,128)}', space=vmem, size = 0x12000, scoped, tag = 'internal scratch']
  %s0 = inlined_call_operand.hbm [shape: f32[4,128], index: 0, kind: input, shape index: {}]
  %s1 = inlined_call_operand.hbm [shape: f32[128,128], index: 1, kind: input, shape index: {}]
  %s2 = inlined_call_operand.vmem [shape: f32[1,128], index: 2, kind: input, shape index: {}]
  %s3 = inlined_call_operand.hbm [shape: f32[4,128], index: 3, kind: output, shape index: {}]
  %s4 = sld [smem:[#allocation0]]
  $region30: #{tpu_custom_call.1} parent=0
    _
  %s6 = ssub.s32 1, %s4
  %s7 = scalar_select 0, %s6, %s4
  $region1: #{tpu_custom_call.1} parent=0
    #allocation2 [shape = 'u8[2048]{0}', space=vmem, size = 0x800, scoped, tag = 'input window, operand 0, single buffered']
    #allocation3 [shape = 's32[1]{0}', space=sflag, size = 0x4, scoped, tag = 'scoped memory for tpu_custom_call.1']
    #allocation4 [shape = 's32[1]{0}', space=sflag, size = 0x4, scoped, tag = 'scoped memory for tpu_custom_call.1']
    #allocation5 [shape = 'u8[65536]{0}', space=vmem, size = 0x10000, scoped, tag = 'input window, operand 1, single buffered']
    #allocation6 [shape = 's32[1]{0}', space=sflag, size = 0x4, scoped, tag = 'scoped memory for tpu_custom_call.1']
    #allocation7 [shape = 'u8[2048]{0}', space=vmem, size = 0x800, scoped, tag = 'output window, operand 0, single buffered']
    %8 = vsyncpa [#allocation3], 0
    %9 = vsyncpa [#allocation6], 0
    %10 = vsyncpa [#allocation4], 0
    // Predicated region
    $region2: #{tpu_custom_call.1} parent=1 // pred_check
      _
    $region3: #{tpu_custom_call.1} parent=1 // pred_check_branch
      %12 = sbr.rel (0) target = $region5
    $region4: #{tpu_custom_call.1} parent=1 // pred_region
      %s14 = ssub.s32 64, 64
      %15 = vsyncadd [#allocation3], %s14
      %s17 = sshll.u32 [#allocation2], 4
      %s18 = int_to_ptr.vmem [resolvable:$true] %s17
      %20 = dma.hbm_to_vmem [thread:$0]  %s0, 64, %s18, [#allocation3]
    $region5: #{tpu_custom_call.1} parent=1 // pred_fallthru
      _
    // Predicated region
    $region6: #{tpu_custom_call.1} parent=1 // pred_check
      _
    $region7: #{tpu_custom_call.1} parent=1 // pred_check_branch
      %22 = sbr.rel (0) target = $region9
    $region8: #{tpu_custom_call.1} parent=1 // pred_region
      %s24 = ssub.s32 2048, 2048
      %25 = vsyncadd [#allocation6], %s24
      %s26 = sshll.u32 [#allocation5], 4
      %s27 = int_to_ptr.vmem [resolvable:$true] %s26
      %32 = dma.hbm_to_vmem [thread:$0]  %s1, 2048, %s27, [#allocation6], 128, 128, 8
    $region9: #{tpu_custom_call.1} parent=1 // pred_fallthru
      _
    // Predicated region
    $region10: #{tpu_custom_call.1} parent=1 // pred_check
      _
    $region11: #{tpu_custom_call.1} parent=1 // pred_check_branch
      %34 = sbr.rel (0) target = $region13
    $region12: #{tpu_custom_call.1} parent=1 // pred_region
      _
    $region13: #{tpu_custom_call.1} parent=1 // pred_fallthru
      _
    // Predicated region
    $region14: #{tpu_custom_call.1} parent=1 // pred_check
      _
    $region15: #{tpu_custom_call.1} parent=1 // pred_check_branch
      %36 = sbr.rel (0) target = $region17
    $region16: #{tpu_custom_call.1} parent=1 // pred_region
      %37 = dma.done [#allocation3], 64
    $region17: #{tpu_custom_call.1} parent=1 // pred_fallthru
      _
    // Predicated region
    $region18: #{tpu_custom_call.1} parent=1 // pred_check
      _
    $region19: #{tpu_custom_call.1} parent=1 // pred_check_branch
      %39 = sbr.rel (0) target = $region21
    $region20: #{tpu_custom_call.1} parent=1 // pred_region
      %40 = dma.done [#allocation6], 2048
    $region21: #{tpu_custom_call.1} parent=1 // pred_fallthru
      _
    %v41 = vld [vmem:[#allocation2] sm:$0xf]
    %v42 = vld [vmem:[#allocation5] sm:$0xff]
    %v43 = vld [vmem:[#allocation5 + $0x8] sm:$0xff]
    %v44 = vld [vmem:[#allocation5 + $0x10] sm:$0xff]
    %v45 = vld [vmem:[#allocation5 + $0x18] sm:$0xff]
    %v46 = vld [vmem:[#allocation5 + $0x20] sm:$0xff]
    %v47 = vld [vmem:[#allocation5 + $0x28] sm:$0xff]
    %v48 = vld [vmem:[#allocation5 + $0x30] sm:$0xff]
    %v49 = vld [vmem:[#allocation5 + $0x38] sm:$0xff]
    %v50 = vld [vmem:[#allocation5 + $0x40] sm:$0xff]
    %v51 = vld [vmem:[#allocation5 + $0x48] sm:$0xff]
    %v52 = vld [vmem:[#allocation5 + $0x50] sm:$0xff]
    %v53 = vld [vmem:[#allocation5 + $0x58] sm:$0xff]
    %v54 = vld [vmem:[#allocation5 + $0x60] sm:$0xff]
    %v55 = vld [vmem:[#allocation5 + $0x68] sm:$0xff]
    %v56 = vld [vmem:[#allocation5 + $0x70] sm:$0xff]
    %v57 = vld [vmem:[#allocation5 + $0x78] sm:$0xff]
    %v58 = vld [vmem:[%s2] sm:$0x1]
    %v60 = vlaneseq
    %v61 = vshrl.u32 %v60, 7
    %v62 = vsub.s32 0, %v61
    %v63 = vrot.slane %v58, %v62
    %65 = vmatprep.subr.mxu0 0.0
    %66 = vmatpush1.msra.mxu0 %v42
    %67 = vmatprep.subr.mxu0 0.0
    %68 = vmatpush1.msra.mxu0 %v43
    %69 = vmatprep.subr.mxu0 0.0
    %70 = vmatpush1.msra.mxu0 %v44
    %71 = vmatprep.subr.mxu0 0.0
    %72 = vmatpush1.msra.mxu0 %v45
    %73 = vmatprep.subr.mxu0 0.0
    %74 = vmatpush1.msra.mxu0 %v46
    %75 = vmatprep.subr.mxu0 0.0
    %76 = vmatpush1.msra.mxu0 %v47
    %77 = vmatprep.subr.mxu0 0.0
    %78 = vmatpush1.msra.mxu0 %v48
    %79 = vmatprep.subr.mxu0 0.0
    %80 = vmatpush1.msra.mxu0 %v49
    %81 = vmatprep.subr.mxu0 0.0
    %82 = vmatpush1.msra.mxu0 %v50
    %83 = vmatprep.subr.mxu0 0.0
    %84 = vmatpush1.msra.mxu0 %v51
    %85 = vmatprep.subr.mxu0 0.0
    %86 = vmatpush1.msra.mxu0 %v52
    %87 = vmatprep.subr.mxu0 0.0
    %88 = vmatpush1.msra.mxu0 %v53
    %89 = vmatprep.subr.mxu0 0.0
    %90 = vmatpush1.msra.mxu0 %v54
    %91 = vmatprep.subr.mxu0 0.0
    %92 = vmatpush1.msra.mxu0 %v55
    %93 = vmatprep.subr.mxu0 0.0
    %94 = vmatpush1.msra.mxu0 %v56
    %95 = vmatprep.subr.mxu0 0.0
    %96 = vmatpush1.msra.mxu0 %v57
    %97 = vmatprep.subr.mxu0 0.0
    %98 = vmatpush1.msra.mxu0 0.0
    %99 = vmatprep.subr.mxu0 0.0
    %100 = vmatpush1.msra.mxu0 0.0
    %101 = vmatprep.subr.mxu0 0.0
    %102 = vmatpush1.msra.mxu0 0.0
    %103 = vmatprep.subr.mxu0 0.0
    %104 = vmatpush1.msra.mxu0 0.0
    %105 = vmatprep.subr.mxu0 0.0
    %106 = vmatpush1.msra.mxu0 0.0
    %107 = vmatprep.subr.mxu0 0.0
    %108 = vmatpush1.msra.mxu0 0.0
    %109 = vmatprep.subr.mxu0 0.0
    %110 = vmatpush1.msra.mxu0 0.0
    %111 = vmatprep.subr.mxu0 0.0
    %112 = vmatpush1.msra.mxu0 0.0
    %113 = vmatprep.subr.mxu0 0.0
    %114 = vmatpush1.msra.mxu0 0.0
    %115 = vmatprep.subr.mxu0 0.0
    %116 = vmatpush1.msra.mxu0 0.0
    %117 = vmatprep.subr.mxu0 0.0
    %118 = vmatpush1.msra.mxu0 0.0
    %119 = vmatprep.subr.mxu0 0.0
    %120 = vmatpush1.msra.mxu0 0.0
    %121 = vmatprep.subr.mxu0 0.0
    %122 = vmatpush1.msra.mxu0 0.0
    %123 = vmatprep.subr.mxu0 0.0
    %124 = vmatpush1.msra.mxu0 0.0
    %125 = vmatprep.subr.mxu0 0.0
    %126 = vmatpush1.msra.mxu0 0.0
    %127 = vmatprep.subr.mxu0 0.0
    %128 = vmatpush1.msra.mxu0 0.0
    %129 = vmatprep.mubr.f32.mxu0 0.0
    %130 = vmatmul.mubr.f32.gmra.mrb[0].mxu0 %v41
    %v131 = vpop.f32.mrb[0].mxu0
    %v132 = vadd.f32 %v63, %v131
    %v133 = vpop.f32.mrb[0].mxu0
    %134 = vdwg.mxu0
    %135 = vst [vmem:[#allocation7] sm:$0xf] %v132
    // Predicated region
    $region22: #{tpu_custom_call.1} parent=1 // pred_check
      _
    $region23: #{tpu_custom_call.1} parent=1 // pred_check_branch
      %137 = sbr.rel (0) target = $region25
    $region24: #{tpu_custom_call.1} parent=1 // pred_region
      %s139 = ssub.s32 64, 64
      %140 = vsyncadd [#allocation4], %s139
      %s142 = sshll.u32 [#allocation7], 4
      %s143 = int_to_ptr.vmem [resolvable:$true] %s142
      %145 = dma.vmem_to_hbm [thread:$0]  %s143, 64, %s3, [#allocation4]
    $region25: #{tpu_custom_call.1} parent=1 // pred_fallthru
      _
    // Predicated region
    $region26: #{tpu_custom_call.1} parent=1 // pred_check
      _
    $region27: #{tpu_custom_call.1} parent=1 // pred_check_branch
      %147 = sbr.rel (0) target = $region29
    $region28: #{tpu_custom_call.1} parent=1 // pred_region
      %148 = dma.done [#allocation4], 64
    $region29: #{tpu_custom_call.1} parent=1 // pred_fallthru
      _
    %149 = vsyncpa [#allocation3], 1
    %150 = vsyncpa [#allocation6], 1
    %151 = vsyncpa [#allocation4], 1

</llo_original>
